<compile_context>
chip_gen: v5e
topology: v5e:2x2
jax: 0.10.0
libtpu: 0.0.40
codegen_flags: <defaults>
</compile_context>

<pallas_src>
import jax
import jax.numpy as jnp
from jax import lax
from jax.experimental import pallas as pl
from jax.experimental.pallas import tpu as pltpu


_BN_EPS = 1e-5


def _round_up(n, m):
    return ((n + m - 1) // m) * m


def _vmem_limit_bytes():
    """Generation-aware VMEM limit: 3/4 of physical, capped at 100 MiB."""
    cap = 64 * 1024 * 1024  # conservative fallback (v7x physical VMEM)
    try:
        info = pltpu.get_tpu_info()
        cap = int(getattr(info, "vmem_capacity_bytes", cap)) or cap
    except Exception:
        pass
    return min((cap * 3) // 4, 100 * 1024 * 1024)


def _padded_channels(c):
    """Pad the output-channel axis to a multiple of 128 only when cheap."""
    cp = _round_up(c, 128)
    # Lane-dense stores / full MXU width are worth <=50% extra y traffic
    # (real Tiramisu C = 112/192/304/464/656); never pad tiny toy C.
    return cp if cp <= int(1.5 * c) else c


def _divisors(n):
    return [d for d in range(1, n + 1) if n % d == 0]


def _pick_row_tile(rows, wo, c_in, c_out_p, budget_bytes):
    """Largest divisor of `rows` whose pass-1 working set fits the budget.

    Footprints include (8,128)/(16,128) VMEM layout padding, double-buffered
    pipelined blocks AND the in-kernel temporaries (pooled tile, f32 matmul
    result, y*y).  (tr * wo) is kept a multiple of 16 (preferred) / 8 so the
    flattened bf16 y block stays tile-aligned (no Mosaic relayout).
    """
    wo_p = _round_up(wo, 8)
    cin2_l = _round_up(2 * c_in, 128)
    cp_l = _round_up(c_out_p, 128)

    def tile_bytes(tr):
        tm = tr * wo
        x_blk = tr * 2 * wo_p * cin2_l * 4            # f32 input block
        y_blk = _round_up(tm, 16) * cp_l * 2          # bf16 y block
        st_blk = 2 * 8 * cp_l * 4                     # per-tile sum / sumsq
        pipelined = 2 * (x_blk + y_blk + st_blk)      # double-buffered
        temps = x_blk + 3 * _round_up(tm, 8) * cp_l * 4  # pooled + f32 y + y*y
        return pipelined + temps

    const_bytes = _round_up(c_in, 16) * cp_l * 2 + 8 * cp_l * 4  # bf16 w + bias

    divs = _divisors(rows)
    for align in (16, 8, 1):
        cands = [d for d in divs if (d * wo) % align == 0 or d == rows]
        fitting = [d for d in cands
                   if tile_bytes(d) + const_bytes <= budget_bytes]
        if fitting:
            multi = [d for d in fitting if rows // d >= 2]  # keep 2 TCs busy
            return max(multi) if multi else max(fitting)
    # Nothing fits the budget: take the smallest aligned tile (still correct).
    best = [d for d in divs if (d * wo) % 8 == 0 or d == rows] or divs
    return min(best)


def _pick_epilogue_tile(m, c_out, c_out_p, budget_bytes):
    """Independent (much larger) row tile for the elementwise BN epilogue."""
    cp_l = _round_up(c_out_p, 128)
    c_l = _round_up(c_out, 128)

    def tile_bytes(tm):
        y_blk = _round_up(tm, 16) * cp_l * 2          # bf16 y block
        o_blk = _round_up(tm, 8) * c_l * 4            # f32 out block
        return 2 * (y_blk + o_blk) + _round_up(tm, 8) * c_l * 4  # + f32 temp

    divs = _divisors(m)
    for align in (16, 8, 1):
        cands = [d for d in divs if d % align == 0 or d == m]
        fitting = [d for d in cands if tile_bytes(d) <= budget_bytes]
        if fitting:
            multi = [d for d in fitting if m // d >= 2]
            return max(multi) if multi else max(fitting)
    return min(divs)


def _pool_conv_relu_kernel(x_ref, w_ref, b_ref, y_ref, sum_ref, sq_ref):
    """Pass 1: 2x2 maxpool -> 1x1 conv (bf16 MXU, f32 acc) + bias -> ReLU,
    plus per-tile per-channel statistics for BatchNorm.

    x_ref:   [TR, 2, Wo, 2*C]  pooling-window rows stacked; the horizontal
                               window pair lives on the lane (channel) axis
    w_ref:   [C, Cp] bf16      conv weight, in->out, out padded to Cp
    b_ref:   [1, Cp] f32       conv bias (padded)
    y_ref:   [TR*Wo, Cp] bf16  pre-BatchNorm activations for this tile
    sum_ref: [1, Cp] f32       per-tile per-channel sum of y (f32)
    sq_ref:  [1, Cp] f32       per-tile per-channel sum of y^2 (f32)
    """
    c = w_ref.shape[0]
    xt = x_ref[...]                                   # [TR, 2, Wo, 2C]
    v = jnp.maximum(xt[:, 0], xt[:, 1])               # vertical max   [TR,Wo,2C]
    p = jnp.maximum(v[..., :c], v[..., c:])           # horizontal max [TR,Wo,C]
    tr, wo, _ = p.shape
    p2 = p.reshape(tr * wo, c)

    # Dropout2d(p=0.2): identity (eval semantics) -- see module-level TODO.

    # 1x1 conv == channel matmul on the MXU: bf16 operands, f32 accumulator.
    y = jnp.dot(p2.astype(jnp.bfloat16), w_ref[...],
                preferred_element_type=jnp.float32)
    y = jnp.maximum(y + b_ref[...], 0.0)

    # Statistics from the f32 accumulator (before the bf16 store).
    sum_ref[...] = jnp.sum(y, axis=0, keepdims=True)
    sq_ref[...] = jnp.sum(y * y, axis=0, keepdims=True)
    y_ref[...] = y.astype(y_ref.dtype)


def _bn_apply_kernel(y_ref, scale_ref, shift_ref, o_ref):
    """Pass 2: apply folded BatchNorm (y * scale + shift), cropping the
    padded channel axis in-kernel (no extra wrapper-side HBM round trip)."""
    c = o_ref.shape[-1]
    y = y_ref[...].astype(jnp.float32)[:, :c]
    o_ref[...] = (y * scale_ref[...] + shift_ref[...]).astype(o_ref.dtype)


def transition_down_nhwc(x_nhwc, conv_w, conv_b, bn_gamma, bn_beta,
                         *, vmem_block_budget_bytes=None):
    """TransitionDown on an NHWC activation. Returns NHWC [N, Ho, Wo, C].

    Preferred entry point when chaining layers: no layout transposes at all.
    """
    n, h, w, c = x_nhwc.shape
    assert h % 2 == 0 and w % 2 == 0, "max_pool2d(kernel_size=2) needs even H, W"
    ho, wo = h // 2, w // 2
    rows = n * ho
    m = rows * wo

    cp = _padded_channels(c)
    vmem_limit = _vmem_limit_bytes()
    budget1 = vmem_block_budget_bytes or vmem_limit // 2
    budget2 = vmem_block_budget_bytes or (vmem_limit * 7) // 10

    # Conv weight [C_out, C_in, 1, 1] -> [C_in, C_out] so y = p @ wt + b,
    # zero-padding the output-channel axis to Cp, bf16 for the MXU.
    wt = jnp.transpose(conv_w.reshape(c, c), (1, 0))
    bias = conv_b.reshape(1, c).astype(jnp.float32)
    if cp != c:
        wt = jnp.pad(wt, ((0, 0), (0, cp - c)))
        bias = jnp.pad(bias, ((0, 0), (0, cp - c)))
    wt = wt.astype(jnp.bfloat16)

    # Free reshape (no data movement): [N, H, W, C] -> [N*Ho, 2, Wo, 2*C].
    x4 = x_nhwc.reshape(rows, 2, wo, 2 * c)

    tr = _pick_row_tile(rows, wo, c, cp, budget1)
    grid1 = rows // tr
    tm = tr * wo

    compiler_params = pltpu.CompilerParams(
        dimension_semantics=("parallel",),
        vmem_limit_bytes=vmem_limit,
    )

    # Pass 1: pool + conv + bias + ReLU, with per-tile BN statistics.
    y, tile_sums, tile_sqs = pl.pallas_call(
        _pool_conv_relu_kernel,
        out_shape=(
            jax.ShapeDtypeStruct((m, cp), jnp.bfloat16),
            jax.ShapeDtypeStruct((grid1, 1, cp), jnp.float32),
            jax.ShapeDtypeStruct((grid1, 1, cp), jnp.float32),
        ),
        grid=(grid1,),
        in_specs=[
            pl.BlockSpec((tr, 2, wo, 2 * c), lambda i: (i, 0, 0, 0)),
            pl.BlockSpec((c, cp), lambda i: (0, 0)),
            pl.BlockSpec((1, cp), lambda i: (0, 0)),
        ],
        out_specs=(
            pl.BlockSpec((tm, cp), lambda i: (i, 0)),
            pl.BlockSpec((None, 1, cp), lambda i: (i, 0, 0)),
            pl.BlockSpec((None, 1, cp), lambda i: (i, 0, 0)),
        ),
        compiler_params=compiler_params,
    )(x4, wt, bias)

    # Combine per-tile statistics -> global training-mode (biased) BN, folded
    # with the affine into one scale/shift per (unpadded) channel.
    # TODO(synk): one-pass E[y^2]-E[y]^2 in f32 can cancel for near-constant
    #             channels at very large M (clamped at 0 as a guard).
    ssum = jnp.sum(tile_sums, axis=(0, 1))[:c]
    ssq = jnp.sum(tile_sqs, axis=(0, 1))[:c]
    mean = ssum / m
    var = jnp.maximum(ssq / m - mean * mean, 0.0)
    inv = lax.rsqrt(var + _BN_EPS)
    scale = (bn_gamma * inv).reshape(1, c).astype(jnp.float32)
    shift = (bn_beta - mean * bn_gamma * inv).reshape(1, c).astype(jnp.float32)

    # Pass 2: normalize, with its own (large) tile; in-kernel channel crop.
    tm2 = _pick_epilogue_tile(m, c, cp, budget2)
    grid2 = m // tm2

    out = pl.pallas_call(
        _bn_apply_kernel,
        out_shape=jax.ShapeDtypeStruct((m, c), jnp.float32),
        grid=(grid2,),
        in_specs=[
            pl.BlockSpec((tm2, cp), lambda i: (i, 0)),
            pl.BlockSpec((1, c), lambda i: (0, 0)),
            pl.BlockSpec((1, c), lambda i: (0, 0)),
        ],
        out_specs=pl.BlockSpec((tm2, c), lambda i: (i, 0)),
        compiler_params=compiler_params,
    )(y, scale, shift)

    return out.reshape(n, ho, wo, c)


def transition_down(x_nchw, conv_w, conv_b, bn_gamma, bn_beta, **kwargs):
    """PyTorch-parity wrapper: NCHW in, NCHW out.

    The two boundary transposes are the only layout copies; a full-network
    port should call `transition_down_nhwc` directly and stay NHWC.
    """
    x_nhwc = jnp.transpose(x_nchw, (0, 2, 3, 1))
    out = transition_down_nhwc(x_nhwc, conv_w, conv_b, bn_gamma, bn_beta, **kwargs)
    return jnp.transpose(out, (0, 3, 1, 2))


if __name__ == "__main__":
    key = jax.random.PRNGKey(0)
    k_x, k_w, k_b = jax.random.split(key, 3)

    N, C, H, W = 2, 8, 16, 16
    x = jax.random.normal(k_x, (N, C, H, W), dtype=jnp.float32)

    # Conv2d(in=C, out=C, k=1, bias=True), xavier_uniform weight init.
    fan_in = fan_out = C
    bound_w = (6.0 / (fan_in + fan_out)) ** 0.5
    conv_w = jax.random.uniform(k_w, (C, C, 1, 1), jnp.float32,
                                minval=-bound_w, maxval=bound_w)
    bound_b = 1.0 / (fan_in ** 0.5)           # PyTorch default conv bias range
    conv_b = jax.random.uniform(k_b, (C,), jnp.float32,
                                minval=-bound_b, maxval=bound_b)

    # BatchNorm2d default affine init.
    bn_gamma = jnp.ones((C,), jnp.float32)
    bn_beta = jnp.zeros((C,), jnp.float32)

    # Small block budget so even this toy shape runs multi-tile grids and
    # exercises the cross-tile BatchNorm-statistics path.
    y = transition_down(x, conv_w, conv_b, bn_gamma, bn_beta,
                        vmem_block_budget_bytes=1 << 20)
    jax.block_until_ready(y)
    assert y.shape == (N, C, H // 2, W // 2)

    # Pure-f32, module-faithful reference.  The kernel deliberately uses bf16
    # MXU operands and a bf16 pre-BN intermediate (perf-review items), so the
    # error is measured in PRE-normalization units (|diff| / (gamma * inv)) to
    # avoid amplification by channels with tiny batch variance; structural
    # bugs show up at O(1) in these units, bf16 rounding at ~1e-2.
    def reference(xin):
        p = xin.reshape(N, C, H // 2, 2, W // 2, 2).max(axis=(3, 5))
        pm = p.transpose(0, 2, 3, 1).reshape(-1, C)
        yy = jnp.dot(pm, conv_w.reshape(C, C).T,
                     precision=lax.Precision.HIGHEST) + conv_b
        yy = jnp.maximum(yy, 0.0)
        mean = yy.mean(axis=0)
        var = jnp.maximum((yy * yy).mean(axis=0) - mean * mean, 0.0)
        inv = lax.rsqrt(var + _BN_EPS)
        yn = yy * (bn_gamma * inv) + (bn_beta - mean * bn_gamma * inv)
        return yn.reshape(N, H // 2, W // 2, C).transpose(0, 3, 1, 2), inv

    ref, inv_ref = reference(x)
    denom = (jnp.abs(bn_gamma) * inv_ref).reshape(1, C, 1, 1)
    scaled_err = float(jnp.max(jnp.abs(y - ref) / denom))
    assert scaled_err < 0.2, f"scaled error too large: {scaled_err}"
    print("KERNEL_OK")
</pallas_src>

<mosaic_0001>
module attributes {stable_mosaic.version = 11 : i64} {
  func.func @_pool_conv_relu_kernel(%arg0: i32, %arg1: memref<8x2x8x16xf32, #tpu.memory_space<vmem>>, %arg2: memref<8x8xbf16, #tpu.memory_space<vmem>>, %arg3: memref<1x8xf32, #tpu.memory_space<vmem>>, %arg4: memref<64x8xbf16, #tpu.memory_space<vmem>>, %arg5: memref<1x1x8xf32, #tpu.memory_space<vmem>>, %arg6: memref<1x1x8xf32, #tpu.memory_space<vmem>>) attributes {dimension_semantics = [#tpu.dimension_semantics<parallel>], iteration_bounds = array<i64: 2>, scalar_prefetch = 0 : i64, scratch_operands = 0 : i64, tpu.core_type = #tpu.core_type<tc>, window_params = [{transform_indices = @transform_0, window_bounds = array<i64: 8, 2, 8, 16>}, {pipeline_mode = #tpu.pipeline_mode<synchronous>, transform_indices = @transform_1, window_bounds = array<i64: 8, 8>}, {pipeline_mode = #tpu.pipeline_mode<synchronous>, transform_indices = @transform_2, window_bounds = array<i64: 1, 8>}, {transform_indices = @transform_3, window_bounds = array<i64: 64, 8>}, {transform_indices = @transform_4, window_bounds = array<i64: 1, 1, 8>}, {transform_indices = @transform_5, window_bounds = array<i64: 1, 1, 8>}]} {
    %c0 = arith.constant 0 : index
    %c0_0 = arith.constant 0 : index
    %c0_1 = arith.constant 0 : index
    %c0_2 = arith.constant 0 : index
    %0 = vector.load %arg1[%c0, %c0_0, %c0_1, %c0_2] : memref<8x2x8x16xf32, #tpu.memory_space<vmem>>, vector<8x2x8x16xf32>
    %1 = vector.extract_strided_slice %0 {offsets = [0, 0, 0, 0], sizes = [8, 1, 8, 16], strides = [1, 1, 1, 1]} : vector<8x2x8x16xf32> to vector<8x1x8x16xf32>
    %2 = vector.shape_cast %1 : vector<8x1x8x16xf32> to vector<8x8x16xf32>
    %3 = vector.extract_strided_slice %0 {offsets = [0, 1, 0, 0], sizes = [8, 1, 8, 16], strides = [1, 1, 1, 1]} : vector<8x2x8x16xf32> to vector<8x1x8x16xf32>
    %4 = vector.shape_cast %3 : vector<8x1x8x16xf32> to vector<8x8x16xf32>
    %5 = arith.maximumf %2, %4 : vector<8x8x16xf32>
    %6 = vector.extract_strided_slice %5 {offsets = [0, 0, 0], sizes = [8, 8, 8], strides = [1, 1, 1]} : vector<8x8x16xf32> to vector<8x8x8xf32>
    %7 = vector.extract_strided_slice %5 {offsets = [0, 0, 8], sizes = [8, 8, 8], strides = [1, 1, 1]} : vector<8x8x16xf32> to vector<8x8x8xf32>
    %8 = arith.maximumf %6, %7 : vector<8x8x8xf32>
    %9 = vector.shape_cast %8 : vector<8x8x8xf32> to vector<64x8xf32>
    %10 = arith.truncf %9 : vector<64x8xf32> to vector<64x8xbf16>
    %c0_3 = arith.constant 0 : index
    %c0_4 = arith.constant 0 : index
    %11 = vector.load %arg2[%c0_3, %c0_4] : memref<8x8xbf16, #tpu.memory_space<vmem>>, vector<8x8xbf16>
    %cst = arith.constant dense<0.000000e+00> : vector<64x8xf32>
    %12 = tpu.matmul %10, %11, %cst {dimension_numbers = #tpu.dot_dimension_numbers<[1], [0], [0], [1], [0, 0, 1, 1], [], []>} : vector<64x8xbf16>, vector<8x8xbf16>, vector<64x8xf32> -> vector<64x8xf32>
    %c0_5 = arith.constant 0 : index
    %c0_6 = arith.constant 0 : index
    %13 = vector.load %arg3[%c0_5, %c0_6] : memref<1x8xf32, #tpu.memory_space<vmem>>, vector<1x8xf32>
    %14 = vector.broadcast %13 : vector<1x8xf32> to vector<64x8xf32>
    %15 = arith.addf %12, %14 : vector<64x8xf32>
    %cst_7 = arith.constant 0.000000e+00 : f32
    %16 = vector.broadcast %cst_7 : f32 to vector<64x8xf32>
    %17 = arith.maximumf %15, %16 : vector<64x8xf32>
    %cst_8 = arith.constant dense<0.000000e+00> : vector<8xf32>
    %18 = vector.multi_reduction <add>, %17, %cst_8 [0] : vector<64x8xf32> to vector<8xf32>
    %19 = vector.shape_cast %18 : vector<8xf32> to vector<1x8xf32>
    %c0_9 = arith.constant 0 : index
    %c0_10 = arith.constant 0 : index
    %c0_11 = arith.constant 0 : index
    %20 = vector.load %arg5[%c0_9, %c0_10, %c0_11] : memref<1x1x8xf32, #tpu.memory_space<vmem>>, vector<1x1x8xf32>
    %21 = vector.shape_cast %20 : vector<1x1x8xf32> to vector<1x8xf32>
    %22 = vector.shape_cast %19 : vector<1x8xf32> to vector<1x1x8xf32>
    tpu.vector_store %arg5[%c0_9, %c0_10, %c0_11], %22 {strides = array<i32>} : memref<1x1x8xf32, #tpu.memory_space<vmem>>, vector<1x1x8xf32>,
    %23 = arith.mulf %17, %17 : vector<64x8xf32>
    %cst_12 = arith.constant dense<0.000000e+00> : vector<8xf32>
    %24 = vector.multi_reduction <add>, %23, %cst_12 [0] : vector<64x8xf32> to vector<8xf32>
    %25 = vector.shape_cast %24 : vector<8xf32> to vector<1x8xf32>
    %c0_13 = arith.constant 0 : index
    %c0_14 = arith.constant 0 : index
    %c0_15 = arith.constant 0 : index
    %26 = vector.load %arg6[%c0_13, %c0_14, %c0_15] : memref<1x1x8xf32, #tpu.memory_space<vmem>>, vector<1x1x8xf32>
    %27 = vector.shape_cast %26 : vector<1x1x8xf32> to vector<1x8xf32>
    %28 = vector.shape_cast %25 : vector<1x8xf32> to vector<1x1x8xf32>
    tpu.vector_store %arg6[%c0_13, %c0_14, %c0_15], %28 {strides = array<i32>} : memref<1x1x8xf32, #tpu.memory_space<vmem>>, vector<1x1x8xf32>,
    %29 = arith.truncf %17 : vector<64x8xf32> to vector<64x8xbf16>
    %c0_16 = arith.constant 0 : index
    %c0_17 = arith.constant 0 : index
    %30 = vector.load %arg4[%c0_16, %c0_17] : memref<64x8xbf16, #tpu.memory_space<vmem>>, vector<64x8xbf16>
    tpu.vector_store %arg4[%c0_16, %c0_17], %29 {strides = array<i32>} : memref<64x8xbf16, #tpu.memory_space<vmem>>, vector<64x8xbf16>,
    return
  }
  func.func @transform_0(%arg0: i32) -> (i32, i32, i32, i32) {
    %c0_i32 = arith.constant 0 : i32
    %c0_i32_0 = arith.constant 0 : i32
    %c0_i32_1 = arith.constant 0 : i32
    %c0_i32_2 = arith.constant 0 : i32
    return %arg0, %c0_i32, %c0_i32_0, %c0_i32_1 : i32, i32, i32, i32
  }
  func.func @transform_1(%arg0: i32) -> (i32, i32) {
    %c0_i32 = arith.constant 0 : i32
    %c0_i32_0 = arith.constant 0 : i32
    %c0_i32_1 = arith.constant 0 : i32
    return %c0_i32, %c0_i32_0 : i32, i32
  }
  func.func @transform_2(%arg0: i32) -> (i32, i32) {
    %c0_i32 = arith.constant 0 : i32
    %c0_i32_0 = arith.constant 0 : i32
    %c0_i32_1 = arith.constant 0 : i32
    return %c0_i32, %c0_i32_0 : i32, i32
  }
  func.func @transform_3(%arg0: i32) -> (i32, i32) {
    %c0_i32 = arith.constant 0 : i32
    %c0_i32_0 = arith.constant 0 : i32
    return %arg0, %c0_i32 : i32, i32
  }
  func.func @transform_4(%arg0: i32) -> (i32, i32, i32) {
    %c0_i32 = arith.constant 0 : i32
    %c0_i32_0 = arith.constant 0 : i32
    %c0_i32_1 = arith.constant 0 : i32
    return %arg0, %c0_i32, %c0_i32_0 : i32, i32, i32
  }
  func.func @transform_5(%arg0: i32) -> (i32, i32, i32) {
    %c0_i32 = arith.constant 0 : i32
    %c0_i32_0 = arith.constant 0 : i32
    %c0_i32_1 = arith.constant 0 : i32
    return %arg0, %c0_i32, %c0_i32_0 : i32, i32, i32
  }
}

</mosaic_0001>

<llo_original>
// kernel: tpu_custom_call.1
$region0: #{tpu_custom_call.1}
  #allocation0 [shape = 'u32[]', space=smem, size = 0x4, offset = 0x4, fixed_abs, tag = 'smem constant byte address 0x4 - core index']
  #allocation1 [shape = 'u32[72,128]{1,0:T(1,128)}', space=vmem, size = 0x9000, scoped, tag = 'internal scratch']
  %s0 = inlined_call_operand.hbm [shape: f32[16,2,8,16], index: 0, kind: input, shape index: {}]
  %s1 = inlined_call_operand.hbm [shape: bf16[8,8], index: 1, kind: input, shape index: {}]
  %s2 = inlined_call_operand.vmem [shape: f32[1,8], index: 2, kind: input, shape index: {}]
  %s3 = inlined_call_operand.vmem [shape: bf16[128,8], index: 3, kind: output, shape index: {0}]
  %s4 = inlined_call_operand.hbm [shape: f32[2,1,8], index: 4, kind: output, shape index: {1}]
  %s5 = inlined_call_operand.hbm [shape: f32[2,1,8], index: 5, kind: output, shape index: {2}]
  %6 = xla_tuple %s3, %s4, %s5
  %s7 = sld [smem:[#allocation0]]
  $region69: #{tpu_custom_call.1} parent=0
    _
  %s9 = ssub.s32 1, %s7
  %s10 = scalar_select 0, %s9, %s7
  $region1: #{tpu_custom_call.1} parent=0
    #allocation2 [shape = 'u8[131072]{0}', space=vmem, size = 0x20000, scoped, tag = 'input window, operand 0']
    #allocation3 [shape = 's32[2]{0}', space=sflag, size = 0x8, scoped, tag = 'scoped memory for tpu_custom_call.1']
    #allocation4 [shape = 's32[2]{0}', space=sflag, size = 0x8, scoped, tag = 'scoped memory for tpu_custom_call.1']
    #allocation5 [shape = 'u8[2048]{0}', space=vmem, size = 0x800, scoped, tag = 'input window, operand 1, single buffered']
    #allocation6 [shape = 's32[1]{0}', space=sflag, size = 0x4, scoped, tag = 'scoped memory for tpu_custom_call.1']
    #allocation7 [shape = 'u8[1024]{0}', space=vmem, size = 0x400, scoped, tag = 'output window, operand 1']
    #allocation8 [shape = 'u8[1024]{0}', space=vmem, size = 0x400, scoped, tag = 'output window, operand 2']
    #allocation9 [shape = 's32[2]{0}', space=sflag, size = 0x8, scoped, tag = 'scoped memory for tpu_custom_call.1']
    %11 = vsyncpa [#allocation3], 0
    %s12 = scalar_lea.sflag [#allocation3], 1
    %13 = vsyncpa %s12, 0
    %14 = vsyncpa [#allocation6], 0
    %15 = vsyncpa [#allocation4], 0
    %s16 = scalar_lea.sflag [#allocation4], 1
    %17 = vsyncpa %s16, 0
    %18 = vsyncpa [#allocation9], 0
    %s19 = scalar_lea.sflag [#allocation9], 1
    %20 = vsyncpa %s19, 0
    loop: start=0, step=1, limit=4
    $region2: #{tpu_custom_call.1} parent=1 // loop_pre_header
      _
    $region3: #{tpu_custom_call.1} parent=1 // loop_header
      %s22 = sphi 0, %s26
      %p23 = scmp.ge.s32.totalorder %s22, 4
      %s32 = sphi 0, %s34
      %s35 = sphi 0, %s32
      %s36 = sphi 0, %s35
      %s52 = sphi 0, %s36
      %s56 = sphi 0, %s56
      %s58 = sphi 0, %s56
      %s59 = sphi 0, %s58
      %s73 = sphi 0, %s59
      %s77 = sphi 0, %s77
      %s79 = sphi 0, %s77
      %s80 = sphi 0, %s79
      %s94 = sphi 0, %s80
      %s100 = sphi 0, %s102
      %s103 = sphi 0, %s100
      %s104 = sphi 0, %s103
      %s120 = sphi 0, %s104
      %s126 = sphi 0, %s128
      %s129 = sphi 0, %s126
      %s130 = sphi 0, %s129
      %s146 = sphi 0, %s130
      %s152 = sphi 0, %s154
      %s155 = sphi 0, %s152
      %s156 = sphi 0, %s155
      %s172 = sphi 0, %s156
    $region4: #{tpu_custom_call.1} parent=1 // loop_header_branch
      %25 = sbr.rel (%p23) target = $region8
    $region5: #{tpu_custom_call.1} parent=1 // loop_body
      %s27 = ssub.s32 %s22, 1
      %s28 = ssub.s32 %s22, 2
      %s29 = sadd.s32 %s22, 1
      %s30 = ssub.s32 %s22, %s29
      %p31 = scmp.eq.s32.totalorder %s30, 0
      %s33 = sadd.s32 %s32, 1
      %s34 = scalar_select %p31, %s32, %s33
      %p37 = pneg %p31
      %p38 = scmp.eq.s32.totalorder %s22, 1
      %p39 = por %p37, %p38
      %p40 = scmp.ne.s32.totalorder %s32, %s35
      %p41 = scmp.eq.s32.totalorder %s22, 0
      %p42 = por %p40, %p41
      %p43 = scmp.ne.s32.totalorder %s32, %s35
      %p44 = scmp.eq.s32.totalorder %s27, 1
      %p45 = por %p43, %p44
      %p46 = scmp.ne.s32.totalorder %s35, %s36
      %p47 = scmp.eq.s32.totalorder %s27, 0
      %p48 = por %p46, %p47
      %p49 = scmp.ne.s32.totalorder %s35, %s36
      %p50 = scmp.eq.s32.totalorder %s28, 1
      %p51 = por %p49, %p50
      %p53 = scmp.ne.s32.totalorder %s36, %s52
      %p54 = scmp.eq.s32.totalorder %s28, 0
      %p55 = por %p53, %p54
      %s57 = sadd.s32 %s56, 1
      %p60 = scmp.eq.s32.totalorder %s22, 1
      %p61 = scmp.ne.s32.totalorder %s56, %s58
      %p62 = scmp.eq.s32.totalorder %s22, 0
      %p63 = por %p61, %p62
      %p64 = scmp.ne.s32.totalorder %s56, %s58
      %p65 = scmp.eq.s32.totalorder %s27, 1
      %p66 = por %p64, %p65
      %p67 = scmp.ne.s32.totalorder %s58, %s59
      %p68 = scmp.eq.s32.totalorder %s27, 0
      %p69 = por %p67, %p68
      %p70 = scmp.ne.s32.totalorder %s58, %s59
      %p71 = scmp.eq.s32.totalorder %s28, 1
      %p72 = por %p70, %p71
      %p74 = scmp.ne.s32.totalorder %s59, %s73
      %p75 = scmp.eq.s32.totalorder %s28, 0
      %p76 = por %p74, %p75
      %s78 = sadd.s32 %s77, 1
      %p81 = scmp.eq.s32.totalorder %s22, 1
      %p82 = scmp.ne.s32.totalorder %s77, %s79
      %p83 = scmp.eq.s32.totalorder %s22, 0
      %p84 = por %p82, %p83
      %p85 = scmp.ne.s32.totalorder %s77, %s79
      %p86 = scmp.eq.s32.totalorder %s27, 1
      %p87 = por %p85, %p86
      %p88 = scmp.ne.s32.totalorder %s79, %s80
      %p89 = scmp.eq.s32.totalorder %s27, 0
      %p90 = por %p88, %p89
      %p91 = scmp.ne.s32.totalorder %s79, %s80
      %p92 = scmp.eq.s32.totalorder %s28, 1
      %p93 = por %p91, %p92
      %p95 = scmp.ne.s32.totalorder %s80, %s94
      %p96 = scmp.eq.s32.totalorder %s28, 0
      %p97 = por %p95, %p96
      %s98 = ssub.s32 %s22, %s29
      %p99 = scmp.eq.s32.totalorder %s98, 0
      %s101 = sadd.s32 %s100, 1
      %s102 = scalar_select %p99, %s100, %s101
      %p105 = pneg %p99
      %p106 = scmp.eq.s32.totalorder %s22, 1
      %p107 = por %p105, %p106
      %p108 = scmp.ne.s32.totalorder %s100, %s103
      %p109 = scmp.eq.s32.totalorder %s22, 0
      %p110 = por %p108, %p109
      %p111 = scmp.ne.s32.totalorder %s100, %s103
      %p112 = scmp.eq.s32.totalorder %s27, 1
      %p113 = por %p111, %p112
      %p114 = scmp.ne.s32.totalorder %s103, %s104
      %p115 = scmp.eq.s32.totalorder %s27, 0
      %p116 = por %p114, %p115
      %p117 = scmp.ne.s32.totalorder %s103, %s104
      %p118 = scmp.eq.s32.totalorder %s28, 1
      %p119 = por %p117, %p118
      %p121 = scmp.ne.s32.totalorder %s104, %s120
      %p122 = scmp.eq.s32.totalorder %s28, 0
      %p123 = por %p121, %p122
      %s124 = ssub.s32 %s22, %s29
      %p125 = scmp.eq.s32.totalorder %s124, 0
      %s127 = sadd.s32 %s126, 1
      %s128 = scalar_select %p125, %s126, %s127
      %p131 = pneg %p125
      %p132 = scmp.eq.s32.totalorder %s22, 1
      %p133 = por %p131, %p132
      %p134 = scmp.ne.s32.totalorder %s126, %s129
      %p135 = scmp.eq.s32.totalorder %s22, 0
      %p136 = por %p134, %p135
      %p137 = scmp.ne.s32.totalorder %s126, %s129
      %p138 = scmp.eq.s32.totalorder %s27, 1
      %p139 = por %p137, %p138
      %p140 = scmp.ne.s32.totalorder %s129, %s130
      %p141 = scmp.eq.s32.totalorder %s27, 0
      %p142 = por %p140, %p141
      %p143 = scmp.ne.s32.totalorder %s129, %s130
      %p144 = scmp.eq.s32.totalorder %s28, 1
      %p145 = por %p143, %p144
      %p147 = scmp.ne.s32.totalorder %s130, %s146
      %p148 = scmp.eq.s32.totalorder %s28, 0
      %p149 = por %p147, %p148
      %s150 = ssub.s32 %s22, %s29
      %p151 = scmp.eq.s32.totalorder %s150, 0
      %s153 = sadd.s32 %s152, 1
      %s154 = scalar_select %p151, %s152, %s153
      %p157 = pneg %p151
      %p158 = scmp.eq.s32.totalorder %s22, 1
      %p159 = por %p157, %p158
      %p160 = scmp.ne.s32.totalorder %s152, %s155
      %p161 = scmp.eq.s32.totalorder %s22, 0
      %p162 = por %p160, %p161
      %p163 = scmp.ne.s32.totalorder %s152, %s155
      %p164 = scmp.eq.s32.totalorder %s27, 1
      %p165 = por %p163, %p164
      %p166 = scmp.ne.s32.totalorder %s155, %s156
      %p167 = scmp.eq.s32.totalorder %s27, 0
      %p168 = por %p166, %p167
      %p169 = scmp.ne.s32.totalorder %s155, %s156
      %p170 = scmp.eq.s32.totalorder %s28, 1
      %p171 = por %p169, %p170
      %p173 = scmp.ne.s32.totalorder %s156, %s172
      %p174 = scmp.eq.s32.totalorder %s28, 0
      %p175 = por %p173, %p174
      %p176 = scmp.le.s32.totalorder 1, %s22
      %p177 = scmp.lt.s32.totalorder %s22, 3
      %p178 = pnand %p176, %p177
      %p179 = pneg %p178
      // Predicated region
      $region9: #{tpu_custom_call.1} parent=5 // pred_check
        _
      $region10: #{tpu_custom_call.1} parent=5 // pred_check_branch
        %181 = sbr.rel (%p178) target = $region12
      $region11: #{tpu_custom_call.1} parent=5 // pred_region
        %s182 = ssub.s32 %s22, 1
        // Predicated region
        $region13: #{tpu_custom_call.1} parent=11 // pred_check
          %p183 = pneg %p69
        $region14: #{tpu_custom_call.1} parent=11 // pred_check_branch
          %185 = sbr.rel (%p183) target = $region16
        $region15: #{tpu_custom_call.1} parent=11 // pred_region
          %187 = vsyncadd [#allocation6], 0
          %s189 = sshll.u32 %s1, 4
          %s190 = int_to_ptr.hbm [resolvable:$true] %s189
          %s191 = sshll.u32 [#allocation5], 4
          %s192 = int_to_ptr.vmem [resolvable:$true] %s191
          %194 = dma.hbm_to_vmem [thread:$0]  %s190, 64, %s192, [#allocation6]
        $region16: #{tpu_custom_call.1} parent=11 // pred_fallthru
          _
        // Predicated region
        $region17: #{tpu_custom_call.1} parent=11 // pred_check
          %p195 = pneg %p90
        $region18: #{tpu_custom_call.1} parent=11 // pred_check_branch
          %197 = sbr.rel (%p195) target = $region20
        $region19: #{tpu_custom_call.1} parent=11 // pred_region
          _
        $region20: #{tpu_custom_call.1} parent=11 // pred_fallthru
          _
      $region12: #{tpu_custom_call.1} parent=5 // pred_fallthru
        _
      %p198 = scmp.lt.s32.totalorder %s22, 2
      // Predicated region
      $region21: #{tpu_custom_call.1} parent=5 // pred_check
        %p199 = pneg %p198
      $region22: #{tpu_custom_call.1} parent=5 // pred_check_branch
        %201 = sbr.rel (%p199) target = $region24
      $region23: #{tpu_custom_call.1} parent=5 // pred_region
        // Predicated region
        $region25: #{tpu_custom_call.1} parent=23 // pred_check
          %p202 = pneg %p42
        $region26: #{tpu_custom_call.1} parent=23 // pred_check_branch
          %204 = sbr.rel (%p202) target = $region28
        $region27: #{tpu_custom_call.1} parent=23 // pred_region
          %s205 = sand.u32 %s32, 1
          %s206 = scalar_lea.sflag [#allocation3], %s205
          %s207 = sand.u32 %s32, 1
          %s208 = smul.addr %s207, 128
          %s209 = scalar_lea.vmem [#allocation2], %s208
          %s210 = smul.u32 8, %s22
          %212 = vsyncadd %s206, 0
          %s213 = smul.addr %s210, 2
          %s214 = smul.addr %s213, 8
          %s215 = scalar_lea.hbm %s0, %s214
          %s216 = sshll.u32 %s215, 4
          %s217 = int_to_ptr.hbm [resolvable:$true] %s216
          %s218 = sshll.u32 %s209, 4
          %s219 = int_to_ptr.vmem [resolvable:$true] %s218
          %224 = dma.hbm_to_vmem [thread:$0]  %s217, 2048, %s219, %s206, 128, 128, 8
        $region28: #{tpu_custom_call.1} parent=23 // pred_fallthru
          _
      $region24: #{tpu_custom_call.1} parent=5 // pred_fallthru
        _
      %p225 = scmp.le.s32.totalorder 1, %s22
      %p226 = scmp.lt.s32.totalorder %s22, 3
      %p227 = pnand %p225, %p226
      %p228 = pneg %p227
      // Predicated region
      $region29: #{tpu_custom_call.1} parent=5 // pred_check
        _
      $region30: #{tpu_custom_call.1} parent=5 // pred_check_branch
        %230 = sbr.rel (%p227) target = $region32
      $region31: #{tpu_custom_call.1} parent=5 // pred_region
        %s231 = ssub.s32 %s22, 1
        %s232 = sand.u32 %s35, 1
        %s233 = scalar_lea.sflag [#allocation3], %s232
        %s234 = sand.u32 %s35, 1
        %s235 = smul.addr %s234, 128
        %s236 = scalar_lea.vmem [#allocation2], %s235
        // Predicated region
        $region33: #{tpu_custom_call.1} parent=31 // pred_check
          %p237 = pneg %p48
        $region34: #{tpu_custom_call.1} parent=31 // pred_check_branch
          %239 = sbr.rel (%p237) target = $region36
        $region35: #{tpu_custom_call.1} parent=31 // pred_region
          %241 = dma.done %s233, 2048
        $region36: #{tpu_custom_call.1} parent=31 // pred_fallthru
          _
        // Predicated region
        $region37: #{tpu_custom_call.1} parent=31 // pred_check
          %p242 = pneg %p69
        $region38: #{tpu_custom_call.1} parent=31 // pred_check_branch
          %244 = sbr.rel (%p242) target = $region40
        $region39: #{tpu_custom_call.1} parent=31 // pred_region
          %246 = dma.done [#allocation6], 64
        $region40: #{tpu_custom_call.1} parent=31 // pred_fallthru
          _
        %s247 = sand.u32 %s35, 1
        %s248 = scalar_lea.sflag [#allocation3], %s247
        %s249 = sand.u32 %s35, 1
        %s250 = smul.addr %s249, 128
        %s251 = scalar_lea.vmem [#allocation2], %s250
        %p252 = pneg %p48
        %p253 = pneg %p45
        %p254 = pneg %p69
        %p255 = pneg %p66
        %p256 = pneg %p90
        %p257 = pneg %p87
        %p258 = pneg %p116
        %p259 = pneg %p113
        %s260 = smul.u32 8, %s27
        %p261 = scmp.lt.s32.totalorder %s260, 15
        %s262 = scalar_select %p261, %s260, 15
        %s263 = smul.addr %s262, 4
        %s264 = scalar_lea.vmem %s3, %s263
        %p265 = pneg %p142
        %p266 = pneg %p139
        %s267 = sand.u32 %s129, 1
        %s268 = scalar_lea.sflag [#allocation4], %s267
        %s269 = sand.u32 %s129, 1
        %s270 = scalar_lea.vmem [#allocation7], %s269
        %p271 = pneg %p168
        %p272 = pneg %p165
        %s273 = sand.u32 %s155, 1
        %s274 = scalar_lea.sflag [#allocation9], %s273
        %s275 = sand.u32 %s155, 1
        %s276 = scalar_lea.vmem [#allocation8], %s275
        %s277 = smul.u32 8, %s27
        %s278 = smul.u32 8, %s27
        %p279 = scmp.lt.s32.totalorder %s278, 15
        %s280 = scalar_select %p279, %s278, 15
        %s281 = smul.addr %s280, 4
        %s282 = scalar_lea.vmem %s3, %s281
        %s283 = smul.u32 8, %s27
        %v285 = vld [vmem:[%s236] sm:$0xff]
        %v286 = vld [vmem:[%s236 + $0x8] sm:$0xff]
        %v287 = vld [vmem:[%s236 + $0x10] sm:$0xff]
        %v288 = vld [vmem:[%s236 + $0x18] sm:$0xff]
        %v289 = vld [vmem:[%s236 + $0x20] sm:$0xff]
        %v290 = vld [vmem:[%s236 + $0x28] sm:$0xff]
        %v291 = vld [vmem:[%s236 + $0x30] sm:$0xff]
        %v292 = vld [vmem:[%s236 + $0x38] sm:$0xff]
        %v293 = vld [vmem:[%s236 + $0x40] sm:$0xff]
        %v294 = vld [vmem:[%s236 + $0x48] sm:$0xff]
        %v295 = vld [vmem:[%s236 + $0x50] sm:$0xff]
        %v296 = vld [vmem:[%s236 + $0x58] sm:$0xff]
        %v297 = vld [vmem:[%s236 + $0x60] sm:$0xff]
        %v298 = vld [vmem:[%s236 + $0x68] sm:$0xff]
        %v299 = vld [vmem:[%s236 + $0x70] sm:$0xff]
        %v300 = vld [vmem:[%s236 + $0x78] sm:$0xff]
        %v301 = vmax.f32 %v285, %v286
        %v302 = vmax.f32 %v287, %v288
        %v303 = vmax.f32 %v289, %v290
        %v304 = vmax.f32 %v291, %v292
        %v305 = vmax.f32 %v293, %v294
        %v306 = vmax.f32 %v295, %v296
        %v307 = vmax.f32 %v297, %v298
        %v308 = vmax.f32 %v299, %v300
        %317 = vrot.lane.b32.xlu0 %v301, 120
        %v318 = vpop.permute.xlu0 %317
        %319 = vrot.lane.b32.xlu0 %v302, 120
        %v320 = vpop.permute.xlu0 %319
        %321 = vrot.lane.b32.xlu0 %v303, 120
        %v322 = vpop.permute.xlu0 %321
        %323 = vrot.lane.b32.xlu0 %v304, 120
        %v324 = vpop.permute.xlu0 %323
        %325 = vrot.lane.b32.xlu0 %v305, 120
        %v326 = vpop.permute.xlu0 %325
        %327 = vrot.lane.b32.xlu0 %v306, 120
        %v328 = vpop.permute.xlu0 %327
        %329 = vrot.lane.b32.xlu0 %v307, 120
        %v330 = vpop.permute.xlu0 %329
        %331 = vrot.lane.b32.xlu0 %v308, 120
        %v332 = vpop.permute.xlu0 %331
        %v341 = vmax.f32 %v301, %v318
        %v342 = vmax.f32 %v302, %v320
        %v343 = vmax.f32 %v303, %v322
        %v344 = vmax.f32 %v304, %v324
        %v345 = vmax.f32 %v305, %v326
        %v346 = vmax.f32 %v306, %v328
        %v347 = vmax.f32 %v307, %v330
        %v348 = vmax.f32 %v308, %v332
        %v349 = vpack.c.bf16 %v342, %v341
        %v350 = vpack.c.bf16 %v344, %v343
        %v351 = vpack.c.bf16 %v346, %v345
        %v352 = vpack.c.bf16 %v348, %v347
        %v353 = vld [vmem:[#allocation5] sm:$0xf]
        %v354 = vld [vmem:[%s2] sm:$0x1]
        %v356 = vperm.slane %v354, 0
        %vm358 = vcmask 64512
        %v360 = vsel %vm358, %v349, 0
        %v363 = vsel %vm358, %v350, 0
        %v366 = vsel %vm358, %v351, 0
        %v369 = vsel %vm358, %v352, 0
        %vm371 = vcmask 1043456
        %v373 = vsel %vm371, %v353, 0
        %375 = vmatpush.bf16.msra.mxu0 0
        %376 = vmatpush.bf16.msra.mxu0 0
        %377 = vmatpush.bf16.msra.mxu0 0
        %378 = vmatpush.bf16.msra.mxu0 0
        %379 = vmatpush.bf16.msra.mxu0 0
        %380 = vmatpush.bf16.msra.mxu0 0
        %381 = vmatpush.bf16.msra.mxu0 0
        %382 = vmatpush.bf16.msra.mxu0 %v373
        %383 = vmatmul.bf16.gmra.mxu0 %v360
        %v384 = vpop.f32.mrf.mxu0
        %v385 = vadd.f32 %v356, %v384
        %v386 = vpop.f32.mrf.mxu0
        %v387 = vadd.f32 %v356, %v386
        %388 = vmatmul.bf16.gmra.mxu0 %v363
        %v389 = vpop.f32.mrf.mxu0
        %v390 = vadd.f32 %v356, %v389
        %v391 = vpop.f32.mrf.mxu0
        %v392 = vadd.f32 %v356, %v391
        %393 = vmatmul.bf16.gmra.mxu0 %v366
        %v394 = vpop.f32.mrf.mxu0
        %v395 = vadd.f32 %v356, %v394
        %v396 = vpop.f32.mrf.mxu0
        %v397 = vadd.f32 %v356, %v396
        %398 = vmatmul.bf16.gmra.mxu0 %v369
        %v399 = vpop.f32.mrf.mxu0
        %v400 = vadd.f32 %v356, %v399
        %v401 = vpop.f32.mrf.mxu0
        %v402 = vadd.f32 %v356, %v401
        %403 = vdwg.mxu0
        %v404 = vmax.f32 %v385, 0.0
        %v405 = vmax.f32 %v387, 0.0
        %v406 = vmax.f32 %v390, 0.0
        %v407 = vmax.f32 %v392, 0.0
        %v408 = vmax.f32 %v395, 0.0
        %v409 = vmax.f32 %v397, 0.0
        %v410 = vmax.f32 %v400, 0.0
        %v411 = vmax.f32 %v402, 0.0
        %v412 = vsel %vm358, %v404, 0.0
        %v413 = vsel %vm358, %v405, 0.0
        %v414 = vadd.f32 %v412, %v413
        %v415 = vsel %vm358, %v406, 0.0
        %v416 = vadd.f32 %v414, %v415
        %v417 = vsel %vm358, %v407, 0.0
        %v418 = vadd.f32 %v416, %v417
        %v419 = vsel %vm358, %v408, 0.0
        %v420 = vadd.f32 %v418, %v419
        %v421 = vsel %vm358, %v409, 0.0
        %v422 = vadd.f32 %v420, %v421
        %v423 = vsel %vm358, %v410, 0.0
        %v424 = vadd.f32 %v422, %v423
        %v425 = vsel %vm358, %v411, 0.0
        %v426 = vadd.f32 %v424, %v425
        %v427 = vrot.slane %v426, 4
        %v428 = vadd.f32 %v426, %v427
        %v429 = vrot.slane %v428, 2
        %v430 = vadd.f32 %v428, %v429
        %v431 = vrot.slane %v430, 1
        %v432 = vadd.f32 %v430, %v431
        %vm433 = vcmask 57344
        %434 = vst.msk [vmem:[%s270] sm:$0x1] %vm433, %v432
        %v435 = vmul.f32 %v404, %v404
        %v436 = vmul.f32 %v405, %v405
        %v437 = vmul.f32 %v406, %v406
        %v438 = vmul.f32 %v407, %v407
        %v439 = vmul.f32 %v408, %v408
        %v440 = vmul.f32 %v409, %v409
        %v441 = vmul.f32 %v410, %v410
        %v442 = vmul.f32 %v411, %v411
        %v443 = vsel %vm358, %v435, 0.0
        %v444 = vsel %vm358, %v436, 0.0
        %v445 = vadd.f32 %v443, %v444
        %v446 = vsel %vm358, %v437, 0.0
        %v447 = vadd.f32 %v445, %v446
        %v448 = vsel %vm358, %v438, 0.0
        %v449 = vadd.f32 %v447, %v448
        %v450 = vsel %vm358, %v439, 0.0
        %v451 = vadd.f32 %v449, %v450
        %v452 = vsel %vm358, %v440, 0.0
        %v453 = vadd.f32 %v451, %v452
        %v454 = vsel %vm358, %v441, 0.0
        %v455 = vadd.f32 %v453, %v454
        %v456 = vsel %vm358, %v442, 0.0
        %v457 = vadd.f32 %v455, %v456
        %v458 = vrot.slane %v457, 4
        %v459 = vadd.f32 %v457, %v458
        %v460 = vrot.slane %v459, 2
        %v461 = vadd.f32 %v459, %v460
        %v462 = vrot.slane %v461, 1
        %v463 = vadd.f32 %v461, %v462
        %464 = vst.msk [vmem:[%s276] sm:$0x1] %vm433, %v463
        %v465 = vpack.c.bf16 %v404, %v404
        %v466 = vpack.c.bf16 %v405, %v405
        %v467 = vpack.c.bf16 %v406, %v406
        %v468 = vpack.c.bf16 %v407, %v407
        %v469 = vpack.c.bf16 %v408, %v408
        %v470 = vpack.c.bf16 %v409, %v409
        %v471 = vpack.c.bf16 %v410, %v410
        %v472 = vpack.c.bf16 %v411, %v411
        %vm473 = vcmask 60416
        %474 = vst.msk [vmem:[%s282] sm:$0xf] %vm473, %v465
        %475 = vst.msk [vmem:[%s282 + $0x4] sm:$0xf] %vm473, %v466
        %476 = vst.msk [vmem:[%s282 + $0x8] sm:$0xf] %vm473, %v467
        %477 = vst.msk [vmem:[%s282 + $0xc] sm:$0xf] %vm473, %v468
        %478 = vst.msk [vmem:[%s282 + $0x10] sm:$0xf] %vm473, %v469
        %479 = vst.msk [vmem:[%s282 + $0x14] sm:$0xf] %vm473, %v470
        %480 = vst.msk [vmem:[%s282 + $0x18] sm:$0xf] %vm473, %v471
        %481 = vst.msk [vmem:[%s282 + $0x1c] sm:$0xf] %vm473, %v472
        %s482 = smul.u32 8, %s27
        %p483 = scmp.lt.s32.totalorder %s482, 15
        %s484 = scalar_select %p483, %s482, 15
        %s485 = smul.addr %s484, 4
        %s486 = scalar_lea.vmem %s3, %s485
        %s487 = sand.u32 %s129, 1
        %s488 = scalar_lea.sflag [#allocation4], %s487
        %s489 = sand.u32 %s129, 1
        %s490 = scalar_lea.vmem [#allocation7], %s489
        %s491 = sand.u32 %s155, 1
        %s492 = scalar_lea.sflag [#allocation9], %s491
        %s493 = sand.u32 %s155, 1
        %s494 = scalar_lea.vmem [#allocation8], %s493
        // Predicated region
        $region41: #{tpu_custom_call.1} parent=31 // pred_check
          %p495 = pneg %p113
        $region42: #{tpu_custom_call.1} parent=31 // pred_check_branch
          %497 = sbr.rel (%p495) target = $region44
        $region43: #{tpu_custom_call.1} parent=31 // pred_region
          %s498 = smul.u32 8, %s27
        $region44: #{tpu_custom_call.1} parent=31 // pred_fallthru
          _
        // Predicated region
        $region45: #{tpu_custom_call.1} parent=31 // pred_check
          %p499 = pneg %p139
        $region46: #{tpu_custom_call.1} parent=31 // pred_check_branch
          %501 = sbr.rel (%p499) target = $region48
        $region47: #{tpu_custom_call.1} parent=31 // pred_region
          %503 = vsyncadd %s488, 0
          %s504 = scalar_lea.hbm %s4, %s27
          %s506 = sshll.u32 %s490, 4
          %s507 = int_to_ptr.vmem [resolvable:$true] %s506
          %s508 = sshll.u32 %s504, 4
          %s509 = int_to_ptr.hbm [resolvable:$true] %s508
          %511 = dma.vmem_to_hbm [thread:$0]  %s507, 16, %s509, %s488
        $region48: #{tpu_custom_call.1} parent=31 // pred_fallthru
          _
        // Predicated region
        $region49: #{tpu_custom_call.1} parent=31 // pred_check
          %p512 = pneg %p165
        $region50: #{tpu_custom_call.1} parent=31 // pred_check_branch
          %514 = sbr.rel (%p512) target = $region52
        $region51: #{tpu_custom_call.1} parent=31 // pred_region
          %516 = vsyncadd %s492, 0
          %s517 = scalar_lea.hbm %s5, %s27
          %s519 = sshll.u32 %s494, 4
          %s520 = int_to_ptr.vmem [resolvable:$true] %s519
          %s521 = sshll.u32 %s517, 4
          %s522 = int_to_ptr.hbm [resolvable:$true] %s521
          %524 = dma.vmem_to_hbm [thread:$0]  %s520, 16, %s522, %s492
        $region52: #{tpu_custom_call.1} parent=31 // pred_fallthru
          _
      $region32: #{tpu_custom_call.1} parent=5 // pred_fallthru
        _
      %p525 = scmp.le.s32.totalorder 2, %s22
      // Predicated region
      $region53: #{tpu_custom_call.1} parent=5 // pred_check
        %p526 = pneg %p525
      $region54: #{tpu_custom_call.1} parent=5 // pred_check_branch
        %528 = sbr.rel (%p526) target = $region56
      $region55: #{tpu_custom_call.1} parent=5 // pred_region
        %s529 = ssub.s32 %s22, 2
        // Predicated region
        $region57: #{tpu_custom_call.1} parent=55 // pred_check
          %p530 = pneg %p119
        $region58: #{tpu_custom_call.1} parent=55 // pred_check_branch
          %532 = sbr.rel (%p530) target = $region60
        $region59: #{tpu_custom_call.1} parent=55 // pred_region
          %s533 = smul.u32 8, %s28
          %p534 = scmp.lt.s32.totalorder %s533, 15
          %s535 = scalar_select %p534, %s533, 15
          %s536 = smul.addr %s535, 4
          %s537 = scalar_lea.vmem %s3, %s536
        $region60: #{tpu_custom_call.1} parent=55 // pred_fallthru
          _
        // Predicated region
        $region61: #{tpu_custom_call.1} parent=55 // pred_check
          %p538 = pneg %p145
        $region62: #{tpu_custom_call.1} parent=55 // pred_check_branch
          %540 = sbr.rel (%p538) target = $region64
        $region63: #{tpu_custom_call.1} parent=55 // pred_region
          %s541 = sand.u32 %s130, 1
          %s542 = scalar_lea.sflag [#allocation4], %s541
          %s543 = sand.u32 %s130, 1
          %s544 = scalar_lea.vmem [#allocation7], %s543
          %546 = dma.done %s542, 16
        $region64: #{tpu_custom_call.1} parent=55 // pred_fallthru
          _
        // Predicated region
        $region65: #{tpu_custom_call.1} parent=55 // pred_check
          %p547 = pneg %p171
        $region66: #{tpu_custom_call.1} parent=55 // pred_check_branch
          %549 = sbr.rel (%p547) target = $region68
        $region67: #{tpu_custom_call.1} parent=55 // pred_region
          %s550 = sand.u32 %s156, 1
          %s551 = scalar_lea.sflag [#allocation9], %s550
          %s552 = sand.u32 %s156, 1
          %s553 = scalar_lea.vmem [#allocation8], %s552
          %555 = dma.done %s551, 16
        $region68: #{tpu_custom_call.1} parent=55 // pred_fallthru
          _
      $region56: #{tpu_custom_call.1} parent=5 // pred_fallthru
        _
    $region6: #{tpu_custom_call.1} parent=1 // loop_footer
      %s26 = sadd.s32 1, %s22
    $region7: #{tpu_custom_call.1} parent=1 // loop_footer_branch
      %21 = sbr.rel target = $region3
    $region8: #{tpu_custom_call.1} parent=1 // loop_exit
      _
    %556 = vsyncpa [#allocation3], 1
    %s557 = scalar_lea.sflag [#allocation3], 1
    %558 = vsyncpa %s557, 1
    %559 = vsyncpa [#allocation6], 1
    %560 = vsyncpa [#allocation4], 1
    %s561 = scalar_lea.sflag [#allocation4], 1
    %562 = vsyncpa %s561, 1
    %563 = vsyncpa [#allocation9], 1
    %s564 = scalar_lea.sflag [#allocation9], 1
    %565 = vsyncpa %s564, 1

</llo_original>
